<compile_context>
chip_gen: v6e
topology: v6e:2x2x1
jax: 0.10.0
libtpu: 0.0.40
codegen_flags: <defaults>
</compile_context>

<pallas_src>
import jax
import jax.numpy as jnp
from jax.experimental import pallas as pl
from jax.experimental.pallas import tpu as pltpu


def _round_up(x: int, m: int) -> int:
    return ((x + m - 1) // m) * m


# Row indices inside the packed bias array.
_B1, _LNG, _LNB, _B2, _B3, _B4, _B5 = range(7)


# -----------------------------------------------------------------------------
# Pallas kernel: one batch tile through the whole MLP (5 matmuls + LN + acts)
# -----------------------------------------------------------------------------
def actor_kernel(
    s_ref,      # (TB, state_dim)  f32
    w1_ref,     # (state_dim, 50)  f32   (trunk kept in f32 - tiny)
    w2_ref,     # (50, H)          bf16
    w3_ref,     # (H, H)           bf16
    w4_ref,     # (H, H)           bf16
    w5_ref,     # (H, A_pad)       bf16
    bias_ref,   # (8, Wmax)        f32   rows: b1, ln_g, ln_b, b2, b3, b4, b5, 0
    o_ref,      # (TB, A_pad)      f32
):
    H = w2_ref.shape[1]
    a_pad = w5_ref.shape[1]

    b1 = bias_ref[_B1 : _B1 + 1, 0:50]
    ln_g = bias_ref[_LNG : _LNG + 1, 0:50]
    ln_b = bias_ref[_LNB : _LNB + 1, 0:50]
    b2 = bias_ref[_B2 : _B2 + 1, 0:H]
    b3 = bias_ref[_B3 : _B3 + 1, 0:H]
    b4 = bias_ref[_B4 : _B4 + 1, 0:H]
    b5 = bias_ref[_B5 : _B5 + 1, 0:a_pad]

    # trunk: Linear -> LayerNorm -> Tanh  (all f32; single-pass variance,
    # LayerNorm scale folded into one multiply)
    x = s_ref[...]
    h = jnp.dot(x, w1_ref[...], preferred_element_type=jnp.float32) + b1
    mean = jnp.mean(h, axis=-1, keepdims=True)
    var = jnp.maximum(jnp.mean(h * h, axis=-1, keepdims=True) - mean * mean, 0.0)
    h = (h - mean) * (ln_g * jax.lax.rsqrt(var + 1e-5)) + ln_b
    h = jnp.tanh(h).astype(jnp.bfloat16)

    # policy: 3 x (Linear -> ReLU); bf16 MXU inputs, f32 accumulation
    h = jnp.maximum(
        jnp.dot(h, w2_ref[...], preferred_element_type=jnp.float32) + b2,
        0.0).astype(jnp.bfloat16)
    h = jnp.maximum(
        jnp.dot(h, w3_ref[...], preferred_element_type=jnp.float32) + b3,
        0.0).astype(jnp.bfloat16)
    h = jnp.maximum(
        jnp.dot(h, w4_ref[...], preferred_element_type=jnp.float32) + b4,
        0.0).astype(jnp.bfloat16)

    # W: final Linear -> mu (padded columns have zero weight -> zero output)
    mu = jnp.dot(h, w5_ref[...], preferred_element_type=jnp.float32) + b5
    o_ref[...] = mu.astype(o_ref.dtype)


# -----------------------------------------------------------------------------
# One-time parameter preparation (cast / pad / pack) -- NOT per call.
# -----------------------------------------------------------------------------
def prepare_params(params):
    """Cast weights to bf16, pad w5/b5 to a 128-lane output, and pack the seven
    small bias / LayerNorm vectors into a single (8, Wmax) f32 array."""
    action_dim = params["w5"].shape[1]
    H = params["w2"].shape[1]
    a_pad = _round_up(action_dim, 128)
    w_max = max(50, H, a_pad)

    def row(v):
        v = jnp.asarray(v, jnp.float32).reshape(1, -1)
        return jnp.pad(v, ((0, 0), (0, w_max - v.shape[1])))

    b5 = jnp.pad(jnp.asarray(params["b5"], jnp.float32).reshape(1, -1),
                 ((0, 0), (0, a_pad - action_dim)))
    bias_pack = jnp.concatenate(
        [row(params["b1"]), row(params["ln_g"]), row(params["ln_b"]),
         row(params["b2"]), row(params["b3"]), row(params["b4"]),
         row(b5), jnp.zeros((1, w_max), jnp.float32)],
        axis=0)                                           # (8, Wmax) f32

    return {
        "w1": jnp.asarray(params["w1"], jnp.float32),      # trunk stays f32
        "w2": params["w2"].astype(jnp.bfloat16),
        "w3": params["w3"].astype(jnp.bfloat16),
        "w4": params["w4"].astype(jnp.bfloat16),
        "w5": jnp.pad(params["w5"], ((0, 0), (0, a_pad - action_dim))
                      ).astype(jnp.bfloat16),
        "bias_pack": bias_pack,
        "action_dim": action_dim,
    }


# -----------------------------------------------------------------------------
# Wrapper: tiling + pallas_call.  Expects prepare_params() output.
# -----------------------------------------------------------------------------
def actor_forward(state, prepped, *, batch_tile=1024):
    """state: (B, state_dim) f32. prepped: dict from prepare_params()."""
    B, state_dim = state.shape
    action_dim = prepped["action_dim"]
    a_pad = prepped["w5"].shape[1]

    # Pad batch only to a multiple of 8 sublanes (no full-tile rounding).
    b8 = _round_up(B, 8)
    if b8 != B:
        state = jnp.pad(state, ((0, b8 - B), (0, 0)))

    # Large batch tile (amortizes ~0.35 us/step pipeline overhead), but never
    # larger than ceil(B/2): large batches keep >=2 grid steps so the
    # "parallel" axis can shard across both v7x TensorCores.
    tb = min(batch_tile, max(8, _round_up(pl.cdiv(b8, 2), 8)))
    tb = min(tb, b8)
    grid = (pl.cdiv(b8, tb),)      # boundary block may be ragged (rows masked)

    args = (state, prepped["w1"], prepped["w2"], prepped["w3"],
            prepped["w4"], prepped["w5"], prepped["bias_pack"])

    # Weights / packed biases: full-array block, constant block index ->
    # VMEM-resident across all grid steps (Pallas does not re-DMA them).
    in_specs = [pl.BlockSpec((tb, state_dim), lambda i: (i, 0))]
    in_specs += [pl.BlockSpec(a.shape, lambda i: (0, 0)) for a in args[1:]]

    out = pl.pallas_call(
        actor_kernel,
        out_shape=jax.ShapeDtypeStruct((b8, a_pad), jnp.float32),
        grid=grid,
        in_specs=in_specs,
        out_specs=pl.BlockSpec((tb, a_pad), lambda i: (i, 0)),
        compiler_params=pltpu.CompilerParams(
            # batch tiles are independent -> megacore-shard on v7x
            dimension_semantics=("parallel",),
        ),
    )(*args)

    return out[:B, :action_dim]


# -----------------------------------------------------------------------------
# Deterministic parameter init (mirrors weight_init: orthogonal W, zero bias,
# LayerNorm gamma=1 / beta=0). Weights stored as (in, out).
# -----------------------------------------------------------------------------
def _orthogonal(key, in_dim, out_dim, gain=1.0):
    init = jax.nn.initializers.orthogonal(scale=gain)
    return init(key, (in_dim, out_dim), jnp.float32)


def init_params(key, state_dim, action_dim, hidden_dim):
    k1, k2, k3, k4, k5 = jax.random.split(key, 5)
    z = lambda d: jnp.zeros((1, d), jnp.float32)
    return {
        "w1": _orthogonal(k1, state_dim, 50), "b1": z(50),
        "ln_g": jnp.ones((1, 50), jnp.float32), "ln_b": z(50),
        "w2": _orthogonal(k2, 50, hidden_dim), "b2": z(hidden_dim),
        "w3": _orthogonal(k3, hidden_dim, hidden_dim), "b3": z(hidden_dim),
        "w4": _orthogonal(k4, hidden_dim, hidden_dim), "b4": z(hidden_dim),
        "w5": _orthogonal(k5, hidden_dim, action_dim), "b5": z(action_dim),
    }


# Pure-JAX reference with the same rounding points as the kernel
# (f32 trunk, bf16 policy matmul inputs, f32 accumulation everywhere).
def actor_reference(state, p):
    bf = lambda a: a.astype(jnp.bfloat16)
    h = jnp.dot(state, p["w1"], preferred_element_type=jnp.float32) + p["b1"]
    mean = jnp.mean(h, axis=-1, keepdims=True)
    var = jnp.mean(jnp.square(h - mean), axis=-1, keepdims=True)
    h = (h - mean) * (p["ln_g"] * jax.lax.rsqrt(var + 1e-5)) + p["ln_b"]
    h = bf(jnp.tanh(h))
    h = bf(jnp.maximum(
        jnp.dot(h, bf(p["w2"]), preferred_element_type=jnp.float32) + p["b2"], 0.0))
    h = bf(jnp.maximum(
        jnp.dot(h, bf(p["w3"]), preferred_element_type=jnp.float32) + p["b3"], 0.0))
    h = bf(jnp.maximum(
        jnp.dot(h, bf(p["w4"]), preferred_element_type=jnp.float32) + p["b4"], 0.0))
    return jnp.dot(h, bf(p["w5"]), preferred_element_type=jnp.float32) + p["b5"]


if __name__ == "__main__":
    state_dim, action_dim, hidden_dim, batch = 24, 6, 256, 8

    key = jax.random.PRNGKey(0)
    k_params, k_state = jax.random.split(key)
    params = init_params(k_params, state_dim, action_dim, hidden_dim)
    prepped = prepare_params(params)   # one-time cast / pad / bias packing
    state = jax.random.normal(k_state, (batch, state_dim), jnp.float32)

    mu = actor_forward(state, prepped)
    mu = jax.block_until_ready(mu)

    ref = actor_reference(state, params)
    assert mu.shape == (batch, action_dim)
    assert jnp.allclose(mu, ref, atol=1e-2, rtol=1e-2), "mismatch vs reference"

    print("KERNEL_OK")
</pallas_src>

<mosaic_0001>
module attributes {stable_mosaic.version = 11 : i64} {
  func.func @actor_kernel(%arg0: i32, %arg1: memref<8x24xf32, #tpu.memory_space<vmem>>, %arg2: memref<24x50xf32, #tpu.memory_space<vmem>>, %arg3: memref<50x256xbf16, #tpu.memory_space<vmem>>, %arg4: memref<256x256xbf16, #tpu.memory_space<vmem>>, %arg5: memref<256x256xbf16, #tpu.memory_space<vmem>>, %arg6: memref<256x128xbf16, #tpu.memory_space<vmem>>, %arg7: memref<8x256xf32, #tpu.memory_space<vmem>>, %arg8: memref<8x128xf32, #tpu.memory_space<vmem>>) attributes {dimension_semantics = [#tpu.dimension_semantics<parallel>], iteration_bounds = array<i64: 1>, scalar_prefetch = 0 : i64, scratch_operands = 0 : i64, tpu.core_type = #tpu.core_type<tc>, window_params = [{transform_indices = @transform_0, window_bounds = array<i64: 8, 24>}, {pipeline_mode = #tpu.pipeline_mode<synchronous>, transform_indices = @transform_1, window_bounds = array<i64: 24, 50>}, {pipeline_mode = #tpu.pipeline_mode<synchronous>, transform_indices = @transform_2, window_bounds = array<i64: 50, 256>}, {pipeline_mode = #tpu.pipeline_mode<synchronous>, transform_indices = @transform_3, window_bounds = array<i64: 256, 256>}, {pipeline_mode = #tpu.pipeline_mode<synchronous>, transform_indices = @transform_4, window_bounds = array<i64: 256, 256>}, {pipeline_mode = #tpu.pipeline_mode<synchronous>, transform_indices = @transform_5, window_bounds = array<i64: 256, 128>}, {pipeline_mode = #tpu.pipeline_mode<synchronous>, transform_indices = @transform_6, window_bounds = array<i64: 8, 256>}, {transform_indices = @transform_7, window_bounds = array<i64: 8, 128>}]} {
    %c0 = arith.constant 0 : index
    %c0_0 = arith.constant 0 : index
    %0 = vector.load %arg7[%c0, %c0_0] : memref<8x256xf32, #tpu.memory_space<vmem>>, vector<1x50xf32>
    %c1 = arith.constant 1 : index
    %c0_1 = arith.constant 0 : index
    %1 = vector.load %arg7[%c1, %c0_1] : memref<8x256xf32, #tpu.memory_space<vmem>>, vector<1x50xf32>
    %c2 = arith.constant 2 : index
    %c0_2 = arith.constant 0 : index
    %2 = vector.load %arg7[%c2, %c0_2] : memref<8x256xf32, #tpu.memory_space<vmem>>, vector<1x50xf32>
    %c3 = arith.constant 3 : index
    %c0_3 = arith.constant 0 : index
    %3 = vector.load %arg7[%c3, %c0_3] : memref<8x256xf32, #tpu.memory_space<vmem>>, vector<1x256xf32>
    %c4 = arith.constant 4 : index
    %c0_4 = arith.constant 0 : index
    %4 = vector.load %arg7[%c4, %c0_4] : memref<8x256xf32, #tpu.memory_space<vmem>>, vector<1x256xf32>
    %c5 = arith.constant 5 : index
    %c0_5 = arith.constant 0 : index
    %5 = vector.load %arg7[%c5, %c0_5] : memref<8x256xf32, #tpu.memory_space<vmem>>, vector<1x256xf32>
    %c6 = arith.constant 6 : index
    %c0_6 = arith.constant 0 : index
    %6 = vector.load %arg7[%c6, %c0_6] : memref<8x256xf32, #tpu.memory_space<vmem>>, vector<1x128xf32>
    %c0_7 = arith.constant 0 : index
    %c0_8 = arith.constant 0 : index
    %7 = vector.load %arg1[%c0_7, %c0_8] : memref<8x24xf32, #tpu.memory_space<vmem>>, vector<8x24xf32>
    %c0_9 = arith.constant 0 : index
    %c0_10 = arith.constant 0 : index
    %8 = vector.load %arg2[%c0_9, %c0_10] : memref<24x50xf32, #tpu.memory_space<vmem>>, vector<24x50xf32>
    %cst = arith.constant dense<0.000000e+00> : vector<8x50xf32>
    %9 = tpu.matmul %7, %8, %cst {dimension_numbers = #tpu.dot_dimension_numbers<[1], [0], [0], [1], [0, 0, 1, 1], [], []>} : vector<8x24xf32>, vector<24x50xf32>, vector<8x50xf32> -> vector<8x50xf32>
    %10 = vector.broadcast %0 : vector<1x50xf32> to vector<8x50xf32>
    %11 = arith.addf %9, %10 : vector<8x50xf32>
    %cst_11 = arith.constant dense<0.000000e+00> : vector<8xf32>
    %12 = vector.multi_reduction <add>, %11, %cst_11 [1] : vector<8x50xf32> to vector<8xf32>
    %13 = vector.shape_cast %12 : vector<8xf32> to vector<8x1xf32>
    %cst_12 = arith.constant 5.000000e+01 : f32
    %14 = vector.broadcast %cst_12 : f32 to vector<8x1xf32>
    %15 = arith.divf %13, %14 : vector<8x1xf32>
    %16 = arith.mulf %11, %11 : vector<8x50xf32>
    %cst_13 = arith.constant dense<0.000000e+00> : vector<8xf32>
    %17 = vector.multi_reduction <add>, %16, %cst_13 [1] : vector<8x50xf32> to vector<8xf32>
    %18 = vector.shape_cast %17 : vector<8xf32> to vector<8x1xf32>
    %cst_14 = arith.constant 5.000000e+01 : f32
    %19 = vector.broadcast %cst_14 : f32 to vector<8x1xf32>
    %20 = arith.divf %18, %19 : vector<8x1xf32>
    %21 = arith.mulf %15, %15 : vector<8x1xf32>
    %22 = arith.subf %20, %21 : vector<8x1xf32>
    %cst_15 = arith.constant 0.000000e+00 : f32
    %23 = vector.broadcast %cst_15 : f32 to vector<8x1xf32>
    %24 = arith.maximumf %22, %23 : vector<8x1xf32>
    %25 = vector.broadcast %15 : vector<8x1xf32> to vector<8x50xf32>
    %26 = arith.subf %11, %25 : vector<8x50xf32>
    %cst_16 = arith.constant 9.99999974E-6 : f32
    %27 = vector.broadcast %cst_16 : f32 to vector<8x1xf32>
    %28 = arith.addf %24, %27 : vector<8x1xf32>
    %29 = math.rsqrt %28 : vector<8x1xf32>
    %30 = vector.broadcast %1 : vector<1x50xf32> to vector<8x50xf32>
    %31 = vector.broadcast %29 : vector<8x1xf32> to vector<8x50xf32>
    %32 = arith.mulf %30, %31 : vector<8x50xf32>
    %33 = arith.mulf %26, %32 : vector<8x50xf32>
    %34 = vector.broadcast %2 : vector<1x50xf32> to vector<8x50xf32>
    %35 = arith.addf %33, %34 : vector<8x50xf32>
    %36 = math.tanh %35 : vector<8x50xf32>
    %37 = arith.truncf %36 : vector<8x50xf32> to vector<8x50xbf16>
    %c0_17 = arith.constant 0 : index
    %c0_18 = arith.constant 0 : index
    %38 = vector.load %arg3[%c0_17, %c0_18] : memref<50x256xbf16, #tpu.memory_space<vmem>>, vector<50x256xbf16>
    %cst_19 = arith.constant dense<0.000000e+00> : vector<8x256xf32>
    %39 = tpu.matmul %37, %38, %cst_19 {dimension_numbers = #tpu.dot_dimension_numbers<[1], [0], [0], [1], [0, 0, 1, 1], [], []>} : vector<8x50xbf16>, vector<50x256xbf16>, vector<8x256xf32> -> vector<8x256xf32>
    %40 = vector.broadcast %3 : vector<1x256xf32> to vector<8x256xf32>
    %41 = arith.addf %39, %40 : vector<8x256xf32>
    %cst_20 = arith.constant 0.000000e+00 : f32
    %42 = vector.broadcast %cst_20 : f32 to vector<8x256xf32>
    %43 = arith.maximumf %41, %42 : vector<8x256xf32>
    %44 = arith.truncf %43 : vector<8x256xf32> to vector<8x256xbf16>
    %c0_21 = arith.constant 0 : index
    %c0_22 = arith.constant 0 : index
    %45 = vector.load %arg4[%c0_21, %c0_22] : memref<256x256xbf16, #tpu.memory_space<vmem>>, vector<256x256xbf16>
    %cst_23 = arith.constant dense<0.000000e+00> : vector<8x256xf32>
    %46 = tpu.matmul %44, %45, %cst_23 {dimension_numbers = #tpu.dot_dimension_numbers<[1], [0], [0], [1], [0, 0, 1, 1], [], []>} : vector<8x256xbf16>, vector<256x256xbf16>, vector<8x256xf32> -> vector<8x256xf32>
    %47 = vector.broadcast %4 : vector<1x256xf32> to vector<8x256xf32>
    %48 = arith.addf %46, %47 : vector<8x256xf32>
    %cst_24 = arith.constant 0.000000e+00 : f32
    %49 = vector.broadcast %cst_24 : f32 to vector<8x256xf32>
    %50 = arith.maximumf %48, %49 : vector<8x256xf32>
    %51 = arith.truncf %50 : vector<8x256xf32> to vector<8x256xbf16>
    %c0_25 = arith.constant 0 : index
    %c0_26 = arith.constant 0 : index
    %52 = vector.load %arg5[%c0_25, %c0_26] : memref<256x256xbf16, #tpu.memory_space<vmem>>, vector<256x256xbf16>
    %cst_27 = arith.constant dense<0.000000e+00> : vector<8x256xf32>
    %53 = tpu.matmul %51, %52, %cst_27 {dimension_numbers = #tpu.dot_dimension_numbers<[1], [0], [0], [1], [0, 0, 1, 1], [], []>} : vector<8x256xbf16>, vector<256x256xbf16>, vector<8x256xf32> -> vector<8x256xf32>
    %54 = vector.broadcast %5 : vector<1x256xf32> to vector<8x256xf32>
    %55 = arith.addf %53, %54 : vector<8x256xf32>
    %cst_28 = arith.constant 0.000000e+00 : f32
    %56 = vector.broadcast %cst_28 : f32 to vector<8x256xf32>
    %57 = arith.maximumf %55, %56 : vector<8x256xf32>
    %58 = arith.truncf %57 : vector<8x256xf32> to vector<8x256xbf16>
    %c0_29 = arith.constant 0 : index
    %c0_30 = arith.constant 0 : index
    %59 = vector.load %arg6[%c0_29, %c0_30] : memref<256x128xbf16, #tpu.memory_space<vmem>>, vector<256x128xbf16>
    %cst_31 = arith.constant dense<0.000000e+00> : vector<8x128xf32>
    %60 = tpu.matmul %58, %59, %cst_31 {dimension_numbers = #tpu.dot_dimension_numbers<[1], [0], [0], [1], [0, 0, 1, 1], [], []>} : vector<8x256xbf16>, vector<256x128xbf16>, vector<8x128xf32> -> vector<8x128xf32>
    %61 = vector.broadcast %6 : vector<1x128xf32> to vector<8x128xf32>
    %62 = arith.addf %60, %61 : vector<8x128xf32>
    %c0_32 = arith.constant 0 : index
    %c0_33 = arith.constant 0 : index
    %63 = vector.load %arg8[%c0_32, %c0_33] : memref<8x128xf32, #tpu.memory_space<vmem>>, vector<8x128xf32>
    tpu.vector_store %arg8[%c0_32, %c0_33], %62 {strides = array<i32>} : memref<8x128xf32, #tpu.memory_space<vmem>>, vector<8x128xf32>,
    return
  }
  func.func @transform_0(%arg0: i32) -> (i32, i32) {
    %c0_i32 = arith.constant 0 : i32
    %c0_i32_0 = arith.constant 0 : i32
    return %arg0, %c0_i32 : i32, i32
  }
  func.func @transform_1(%arg0: i32) -> (i32, i32) {
    %c0_i32 = arith.constant 0 : i32
    %c0_i32_0 = arith.constant 0 : i32
    %c0_i32_1 = arith.constant 0 : i32
    return %c0_i32, %c0_i32_0 : i32, i32
  }
  func.func @transform_2(%arg0: i32) -> (i32, i32) {
    %c0_i32 = arith.constant 0 : i32
    %c0_i32_0 = arith.constant 0 : i32
    %c0_i32_1 = arith.constant 0 : i32
    return %c0_i32, %c0_i32_0 : i32, i32
  }
  func.func @transform_3(%arg0: i32) -> (i32, i32) {
    %c0_i32 = arith.constant 0 : i32
    %c0_i32_0 = arith.constant 0 : i32
    %c0_i32_1 = arith.constant 0 : i32
    return %c0_i32, %c0_i32_0 : i32, i32
  }
  func.func @transform_4(%arg0: i32) -> (i32, i32) {
    %c0_i32 = arith.constant 0 : i32
    %c0_i32_0 = arith.constant 0 : i32
    %c0_i32_1 = arith.constant 0 : i32
    return %c0_i32, %c0_i32_0 : i32, i32
  }
  func.func @transform_5(%arg0: i32) -> (i32, i32) {
    %c0_i32 = arith.constant 0 : i32
    %c0_i32_0 = arith.constant 0 : i32
    %c0_i32_1 = arith.constant 0 : i32
    return %c0_i32, %c0_i32_0 : i32, i32
  }
  func.func @transform_6(%arg0: i32) -> (i32, i32) {
    %c0_i32 = arith.constant 0 : i32
    %c0_i32_0 = arith.constant 0 : i32
    %c0_i32_1 = arith.constant 0 : i32
    return %c0_i32, %c0_i32_0 : i32, i32
  }
  func.func @transform_7(%arg0: i32) -> (i32, i32) {
    %c0_i32 = arith.constant 0 : i32
    %c0_i32_0 = arith.constant 0 : i32
    return %arg0, %c0_i32 : i32, i32
  }
}

</mosaic_0001>

<llo_original>
// kernel: tpu_custom_call.1
$region0: #{tpu_custom_call.1}
  #allocation0 [shape = 'u32[]', space=smem, size = 0x4, offset = 0x4, fixed_abs, tag = 'smem constant byte address 0x4 - core index']
  #allocation1 [shape = 'u32[144,128]{1,0:T(1,128)}', space=vmem, size = 0x12000, scoped, tag = 'internal scratch']
  %s0 = inlined_call_operand.hbm [shape: f32[8,24], index: 0, kind: input, shape index: {}]
  %s1 = inlined_call_operand.hbm [shape: f32[24,50], index: 1, kind: input, shape index: {}]
  %s2 = inlined_call_operand.hbm [shape: bf16[50,256], index: 2, kind: input, shape index: {}]
  %s3 = inlined_call_operand.hbm [shape: bf16[256,256], index: 3, kind: input, shape index: {}]
  %s4 = inlined_call_operand.hbm [shape: bf16[256,256], index: 4, kind: input, shape index: {}]
  %s5 = inlined_call_operand.hbm [shape: bf16[256,128], index: 5, kind: input, shape index: {}]
  %s6 = inlined_call_operand.hbm [shape: f32[8,256], index: 6, kind: input, shape index: {}]
  %s7 = inlined_call_operand.hbm [shape: f32[8,128], index: 7, kind: output, shape index: {}]
  %s8 = sld [smem:[#allocation0]]
  $region66: #{tpu_custom_call.1} parent=0
    _
  %s10 = ssub.s32 1, %s8
  %s11 = scalar_select 0, %s10, %s8
  $region1: #{tpu_custom_call.1} parent=0
    #allocation2 [shape = 'u8[4096]{0}', space=vmem, size = 0x1000, scoped, tag = 'input window, operand 0, single buffered']
    #allocation3 [shape = 's32[1]{0}', space=sflag, size = 0x4, scoped, tag = 'scoped memory for tpu_custom_call.1']
    #allocation4 [shape = 's32[1]{0}', space=sflag, size = 0x4, scoped, tag = 'scoped memory for tpu_custom_call.1']
    #allocation5 [shape = 'u8[12288]{0}', space=vmem, size = 0x3000, scoped, tag = 'input window, operand 1, single buffered']
    #allocation6 [shape = 's32[1]{0}', space=sflag, size = 0x4, scoped, tag = 'scoped memory for tpu_custom_call.1']
    #allocation7 [shape = 'u8[28672]{0}', space=vmem, size = 0x7000, scoped, tag = 'input window, operand 2, single buffered']
    #allocation8 [shape = 'u8[131072]{0}', space=vmem, size = 0x20000, scoped, tag = 'input window, operand 3, single buffered']
    #allocation9 [shape = 's32[1]{0}', space=sflag, size = 0x4, scoped, tag = 'scoped memory for tpu_custom_call.1']
    #allocation10 [shape = 'u8[131072]{0}', space=vmem, size = 0x20000, scoped, tag = 'input window, operand 4, single buffered']
    #allocation11 [shape = 'u8[65536]{0}', space=vmem, size = 0x10000, scoped, tag = 'input window, operand 5, single buffered']
    #allocation12 [shape = 's32[1]{0}', space=sflag, size = 0x4, scoped, tag = 'scoped memory for tpu_custom_call.1']
    #allocation13 [shape = 'u8[8192]{0}', space=vmem, size = 0x2000, scoped, tag = 'input window, operand 6, single buffered']
    #allocation14 [shape = 'u8[4096]{0}', space=vmem, size = 0x1000, scoped, tag = 'output window, operand 0, single buffered']
    %12 = vsyncpa [#allocation3], 0
    %13 = vsyncpa [#allocation6], 0
    %14 = vsyncpa [#allocation9], 0
    %15 = vsyncpa [#allocation12], 0
    %16 = vsyncpa [#allocation4], 0
    // Predicated region
    $region2: #{tpu_custom_call.1} parent=1 // pred_check
      _
    $region3: #{tpu_custom_call.1} parent=1 // pred_check_branch
      %18 = sbr.rel (0) target = $region5
    $region4: #{tpu_custom_call.1} parent=1 // pred_region
      %s20 = ssub.s32 128, 128
      %21 = vsyncadd [#allocation3], %s20
      %s23 = sshll.u32 [#allocation2], 4
      %s24 = int_to_ptr.vmem [resolvable:$true] %s23
      %26 = dma.hbm_to_vmem [thread:$0]  %s0, 128, %s24, [#allocation3]
    $region5: #{tpu_custom_call.1} parent=1 // pred_fallthru
      _
    // Predicated region
    $region6: #{tpu_custom_call.1} parent=1 // pred_check
      _
    $region7: #{tpu_custom_call.1} parent=1 // pred_check_branch
      %28 = sbr.rel (0) target = $region9
    $region8: #{tpu_custom_call.1} parent=1 // pred_region
      %s30 = ssub.s32 384, 384
      %31 = vsyncadd [#allocation6], %s30
      %s32 = sshll.u32 [#allocation5], 4
      %s33 = int_to_ptr.vmem [resolvable:$true] %s32
      %38 = dma.hbm_to_vmem [thread:$0]  %s1, 384, %s33, [#allocation6], 128, 128, 8
    $region9: #{tpu_custom_call.1} parent=1 // pred_fallthru
      _
    // Predicated region
    $region10: #{tpu_custom_call.1} parent=1 // pred_check
      _
    $region11: #{tpu_custom_call.1} parent=1 // pred_check_branch
      %40 = sbr.rel (0) target = $region13
    $region12: #{tpu_custom_call.1} parent=1 // pred_region
      %s42 = ssub.s32 896, 896
      %43 = vsyncadd [#allocation6], %s42
      %s44 = sshll.u32 [#allocation7], 4
      %s45 = int_to_ptr.vmem [resolvable:$true] %s44
      %50 = dma.hbm_to_vmem [thread:$0]  %s2, 896, %s45, [#allocation6], 128, 128, 8
    $region13: #{tpu_custom_call.1} parent=1 // pred_fallthru
      _
    // Predicated region
    $region14: #{tpu_custom_call.1} parent=1 // pred_check
      _
    $region15: #{tpu_custom_call.1} parent=1 // pred_check_branch
      %52 = sbr.rel (0) target = $region17
    $region16: #{tpu_custom_call.1} parent=1 // pred_region
      %s54 = ssub.s32 4096, 4096
      %55 = vsyncadd [#allocation9], %s54
      %s56 = sshll.u32 [#allocation8], 4
      %s57 = int_to_ptr.vmem [resolvable:$true] %s56
      %62 = dma.hbm_to_vmem [thread:$0]  %s3, 4096, %s57, [#allocation9], 128, 128, 8
    $region17: #{tpu_custom_call.1} parent=1 // pred_fallthru
      _
    // Predicated region
    $region18: #{tpu_custom_call.1} parent=1 // pred_check
      _
    $region19: #{tpu_custom_call.1} parent=1 // pred_check_branch
      %64 = sbr.rel (0) target = $region21
    $region20: #{tpu_custom_call.1} parent=1 // pred_region
      %s66 = ssub.s32 4096, 4096
      %67 = vsyncadd [#allocation9], %s66
      %s68 = sshll.u32 [#allocation10], 4
      %s69 = int_to_ptr.vmem [resolvable:$true] %s68
      %74 = dma.hbm_to_vmem [thread:$0]  %s4, 4096, %s69, [#allocation9], 128, 128, 8
    $region21: #{tpu_custom_call.1} parent=1 // pred_fallthru
      _
    // Predicated region
    $region22: #{tpu_custom_call.1} parent=1 // pred_check
      _
    $region23: #{tpu_custom_call.1} parent=1 // pred_check_branch
      %76 = sbr.rel (0) target = $region25
    $region24: #{tpu_custom_call.1} parent=1 // pred_region
      %s78 = ssub.s32 2048, 2048
      %79 = vsyncadd [#allocation12], %s78
      %s80 = sshll.u32 [#allocation11], 4
      %s81 = int_to_ptr.vmem [resolvable:$true] %s80
      %86 = dma.hbm_to_vmem [thread:$0]  %s5, 2048, %s81, [#allocation12], 64, 64, 4
    $region25: #{tpu_custom_call.1} parent=1 // pred_fallthru
      _
    // Predicated region
    $region26: #{tpu_custom_call.1} parent=1 // pred_check
      _
    $region27: #{tpu_custom_call.1} parent=1 // pred_check_branch
      %88 = sbr.rel (0) target = $region29
    $region28: #{tpu_custom_call.1} parent=1 // pred_region
      %s90 = ssub.s32 256, 256
      %91 = vsyncadd [#allocation12], %s90
      %s93 = sshll.u32 [#allocation13], 4
      %s94 = int_to_ptr.vmem [resolvable:$true] %s93
      %96 = dma.hbm_to_vmem [thread:$0]  %s6, 256, %s94, [#allocation12]
    $region29: #{tpu_custom_call.1} parent=1 // pred_fallthru
      _
    // Predicated region
    $region30: #{tpu_custom_call.1} parent=1 // pred_check
      _
    $region31: #{tpu_custom_call.1} parent=1 // pred_check_branch
      %98 = sbr.rel (0) target = $region33
    $region32: #{tpu_custom_call.1} parent=1 // pred_region
      %99 = dma.done [#allocation3], 128
    $region33: #{tpu_custom_call.1} parent=1 // pred_fallthru
      _
    // Predicated region
    $region34: #{tpu_custom_call.1} parent=1 // pred_check
      _
    $region35: #{tpu_custom_call.1} parent=1 // pred_check_branch
      %101 = sbr.rel (0) target = $region37
    $region36: #{tpu_custom_call.1} parent=1 // pred_region
      %102 = dma.done [#allocation6], 384
    $region37: #{tpu_custom_call.1} parent=1 // pred_fallthru
      _
    // Predicated region
    $region38: #{tpu_custom_call.1} parent=1 // pred_check
      _
    $region39: #{tpu_custom_call.1} parent=1 // pred_check_branch
      %104 = sbr.rel (0) target = $region41
    $region40: #{tpu_custom_call.1} parent=1 // pred_region
      %105 = dma.done [#allocation6], 896
    $region41: #{tpu_custom_call.1} parent=1 // pred_fallthru
      _
    // Predicated region
    $region42: #{tpu_custom_call.1} parent=1 // pred_check
      _
    $region43: #{tpu_custom_call.1} parent=1 // pred_check_branch
      %107 = sbr.rel (0) target = $region45
    $region44: #{tpu_custom_call.1} parent=1 // pred_region
      %108 = dma.done [#allocation9], 4096
    $region45: #{tpu_custom_call.1} parent=1 // pred_fallthru
      _
    // Predicated region
    $region46: #{tpu_custom_call.1} parent=1 // pred_check
      _
    $region47: #{tpu_custom_call.1} parent=1 // pred_check_branch
      %110 = sbr.rel (0) target = $region49
    $region48: #{tpu_custom_call.1} parent=1 // pred_region
      %111 = dma.done [#allocation9], 4096
    $region49: #{tpu_custom_call.1} parent=1 // pred_fallthru
      _
    // Predicated region
    $region50: #{tpu_custom_call.1} parent=1 // pred_check
      _
    $region51: #{tpu_custom_call.1} parent=1 // pred_check_branch
      %113 = sbr.rel (0) target = $region53
    $region52: #{tpu_custom_call.1} parent=1 // pred_region
      %114 = dma.done [#allocation12], 2048
    $region53: #{tpu_custom_call.1} parent=1 // pred_fallthru
      _
    // Predicated region
    $region54: #{tpu_custom_call.1} parent=1 // pred_check
      _
    $region55: #{tpu_custom_call.1} parent=1 // pred_check_branch
      %116 = sbr.rel (0) target = $region57
    $region56: #{tpu_custom_call.1} parent=1 // pred_region
      %117 = dma.done [#allocation12], 256
    $region57: #{tpu_custom_call.1} parent=1 // pred_fallthru
      _
    %v119 = vld [vmem:[#allocation13] ss:$0 sm:$0xff]
    %v120 = vld [vmem:[#allocation13 + $0x1] ss:$0 sm:$0xff]
    %v121 = vld [vmem:[#allocation13 + $0x2] ss:$0 sm:$0xff]
    %s122 = scalar_lea.vmem [#allocation13], 3
    %v123 = vld [vmem:[%s122] ss:$8 sm:$0x3]
    %s124 = scalar_lea.vmem [#allocation13], 4
    %v125 = vld [vmem:[%s124] ss:$8 sm:$0x3]
    %s126 = scalar_lea.vmem [#allocation13], 5
    %v127 = vld [vmem:[%s126] ss:$8 sm:$0x3]
    %v128 = vld [vmem:[#allocation13 + $0x6] ss:$0 sm:$0xff]
    %v129 = vld [vmem:[#allocation2] sm:$0xff]
    %v130 = vld [vmem:[#allocation5] sm:$0xff]
    %v131 = vld [vmem:[#allocation5 + $0x8] sm:$0xff]
    %v132 = vld [vmem:[#allocation5 + $0x10] sm:$0xff]
    %vm133 = vcmask 195584
    %v135 = vsel %vm133, %v129, 0
    %137 = vmatprep.subr.mxu0 0.0
    %138 = vmatpush1.msra.mxu0 0.0
    %139 = vmatprep.subr.mxu0 0.0
    %140 = vmatpush1.msra.mxu0 0.0
    %141 = vmatprep.subr.mxu0 0.0
    %142 = vmatpush1.msra.mxu0 0.0
    %143 = vmatprep.subr.mxu0 0.0
    %144 = vmatpush1.msra.mxu0 0.0
    %145 = vmatprep.subr.mxu0 0.0
    %146 = vmatpush1.msra.mxu0 0.0
    %147 = vmatprep.subr.mxu0 0.0
    %148 = vmatpush1.msra.mxu0 0.0
    %149 = vmatprep.subr.mxu0 0.0
    %150 = vmatpush1.msra.mxu0 0.0
    %151 = vmatprep.subr.mxu0 0.0
    %152 = vmatpush1.msra.mxu0 0.0
    %153 = vmatprep.subr.mxu0 0.0
    %154 = vmatpush1.msra.mxu0 0.0
    %155 = vmatprep.subr.mxu0 0.0
    %156 = vmatpush1.msra.mxu0 0.0
    %157 = vmatprep.subr.mxu0 0.0
    %158 = vmatpush1.msra.mxu0 0.0
    %159 = vmatprep.subr.mxu0 0.0
    %160 = vmatpush1.msra.mxu0 0.0
    %161 = vmatprep.subr.mxu0 0.0
    %162 = vmatpush1.msra.mxu0 0.0
    %163 = vmatprep.subr.mxu0 0.0
    %164 = vmatpush1.msra.mxu0 %v132
    %165 = vmatprep.subr.mxu0 0.0
    %166 = vmatpush1.msra.mxu0 %v131
    %167 = vmatprep.subr.mxu0 0.0
    %168 = vmatpush1.msra.mxu0 %v130
    %169 = vmatprep.subr.mxu0 0.0
    %170 = vmatpush2.msra.mxu0 0.0
    %171 = vmatprep.subr.mxu0 0.0
    %172 = vmatpush2.msra.mxu0 0.0
    %173 = vmatprep.subr.mxu0 0.0
    %174 = vmatpush2.msra.mxu0 0.0
    %175 = vmatprep.subr.mxu0 0.0
    %176 = vmatpush2.msra.mxu0 0.0
    %177 = vmatprep.subr.mxu0 0.0
    %178 = vmatpush2.msra.mxu0 0.0
    %179 = vmatprep.subr.mxu0 0.0
    %180 = vmatpush2.msra.mxu0 0.0
    %181 = vmatprep.subr.mxu0 0.0
    %182 = vmatpush2.msra.mxu0 0.0
    %183 = vmatprep.subr.mxu0 0.0
    %184 = vmatpush2.msra.mxu0 0.0
    %185 = vmatprep.subr.mxu0 0.0
    %186 = vmatpush2.msra.mxu0 0.0
    %187 = vmatprep.subr.mxu0 0.0
    %188 = vmatpush2.msra.mxu0 0.0
    %189 = vmatprep.subr.mxu0 0.0
    %190 = vmatpush2.msra.mxu0 0.0
    %191 = vmatprep.subr.mxu0 0.0
    %192 = vmatpush2.msra.mxu0 0.0
    %193 = vmatprep.subr.mxu0 0.0
    %194 = vmatpush2.msra.mxu0 0.0
    %195 = vmatprep.subr.mxu0 0.0
    %196 = vmatpush2.msra.mxu0 0.0
    %197 = vmatprep.subr.mxu0 0.0
    %198 = vmatpush2.msra.mxu0 0.0
    %199 = vmatprep.subr.mxu0 0.0
    %200 = vmatpush2.msra.mxu0 0.0
    %201 = vmatprep.mubr.f32.mxu0 0.0
    %202 = vmatmul.mubr.f32.gmra.mxu0 %v135
    %v203 = vpop.f32.mrf.mxu0
    %v204 = vadd.f32 %v119, %v203
    %v205 = vpop.f32.mrf.mxu0
    %206 = vdwg.mxu0
    %vm207 = vcmask 408576
    %v208 = vsel %vm207, %v204, 0.0
    %209 = vadd.xlane.f32.xlu0 %v208
    %v210 = vpop.xlane.xlu0 %209
    %v211 = vrcp.pop 50.0
    %v212 = vmul.f32 %v210, %v211
    %v213 = vmul.f32 %v204, %v204
    %v214 = vsel %vm207, %v213, 0.0
    %215 = vadd.xlane.f32.xlu0 %v214
    %v216 = vpop.xlane.xlu0 %215
    %v217 = vmul.f32 %v216, %v211
    %v218 = vmul.f32 %v212, %v212
    %v219 = vsub.f32 %v217, %v218
    %v220 = vmax.f32 %v219, 0.0
    %v221 = vsub.f32 %v204, %v212
    %v222 = vadd.f32 %v220, 1e-05
    %v223 = vrsqrt.pop %v222
    %v224 = vmul.f32 %v120, %v223
    %v225 = vmul.f32 %v221, %v224
    %v226 = vadd.f32 %v225, %v121
    %v227 = vtanh.pop %v226
    %v228 = vpack.c.bf16 %v227, %v227
    %v229 = vld [vmem:[#allocation7] sm:$0xff]
    %v230 = vld [vmem:[#allocation7 + $0x8] sm:$0xff]
    %v231 = vld [vmem:[#allocation7 + $0x10] sm:$0xff]
    %v232 = vld [vmem:[#allocation7 + $0x18] sm:$0xff]
    %v233 = vld [vmem:[#allocation7 + $0x20] sm:$0xff]
    %v234 = vld [vmem:[#allocation7 + $0x28] sm:$0xff]
    %v235 = vld [vmem:[#allocation7 + $0x30] sm:$0x11]
    %v237 = vlaneseq
    %v238 = vshrl.u32 %v237, 7
    %v239 = vsub.s32 0, %v238
    %v240 = vrot.slane %v123, %v239
    %v241 = vlaneseq
    %v242 = vshrl.u32 %v241, 7
    %v243 = vsub.s32 1, %v242
    %v244 = vrot.slane %v123, %v243
    %v254 = vunpack.c.l.b16 %v229
    %v255 = vunpack.c.h.b16 %v229
    %v256 = vunpack.c.l.b16 %v230
    %v257 = vunpack.c.h.b16 %v230
    %v258 = vunpack.c.l.b16 %v231
    %v259 = vunpack.c.h.b16 %v231
    %v260 = vunpack.c.l.b16 %v232
    %v261 = vunpack.c.h.b16 %v232
    %v262 = vunpack.c.l.b16 %v233
    %v263 = vunpack.c.h.b16 %v233
    %v264 = vunpack.c.l.b16 %v234
    %v265 = vunpack.c.h.b16 %v234
    %v266 = vunpack.c.l.b16 %v235
    %v267 = vunpack.c.h.b16 %v235
    %v268 = vpack.c.b16 %v256, %v254
    %v269 = vpack.c.b16 %v257, %v255
    %v270 = vpack.c.b16 %v260, %v258
    %v271 = vpack.c.b16 %v261, %v259
    %v272 = vpack.c.b16 %v264, %v262
    %v273 = vpack.c.b16 %v265, %v263
    %v274 = vpack.c.b16 %v266, %v266
    %v275 = vpack.c.b16 %v267, %v267
    %v283 = vsel %vm207, %v228, 0
    %vm285 = vcmask 1040384
    %v287 = vsel %vm285, %v274, 0
    %v290 = vsel %vm285, %v275, 0
    %292 = vmatprep.subr.bf16.mxu0 0
    %293 = vmatpush1.bf16.msra.mxu0 0
    %294 = vmatprep.subr.bf16.mxu0 0
    %295 = vmatpush1.bf16.msra.mxu0 0
    %296 = vmatprep.subr.bf16.mxu0 0
    %297 = vmatpush1.bf16.msra.mxu0 0
    %298 = vmatprep.subr.bf16.mxu0 0
    %299 = vmatpush1.bf16.msra.mxu0 0
    %300 = vmatprep.subr.bf16.mxu0 %v290
    %301 = vmatpush1.bf16.msra.mxu0 %v287
    %302 = vmatprep.subr.bf16.mxu0 %v273
    %303 = vmatpush1.bf16.msra.mxu0 %v272
    %304 = vmatprep.subr.bf16.mxu0 %v271
    %305 = vmatpush1.bf16.msra.mxu0 %v270
    %306 = vmatprep.subr.bf16.mxu0 %v269
    %307 = vmatpush1.bf16.msra.mxu0 %v268
    %308 = vmatprep.subr.bf16.mxu0 0
    %309 = vmatpush2.bf16.msra.mxu0 0
    %310 = vmatprep.subr.bf16.mxu0 0
    %311 = vmatpush2.bf16.msra.mxu0 0
    %312 = vmatprep.subr.bf16.mxu0 0
    %313 = vmatpush2.bf16.msra.mxu0 0
    %314 = vmatprep.subr.bf16.mxu0 0
    %315 = vmatpush2.bf16.msra.mxu0 0
    %316 = vmatprep.subr.bf16.mxu0 0
    %317 = vmatpush2.bf16.msra.mxu0 0
    %318 = vmatprep.subr.bf16.mxu0 0
    %319 = vmatpush2.bf16.msra.mxu0 0
    %320 = vmatprep.subr.bf16.mxu0 0
    %321 = vmatpush2.bf16.msra.mxu0 0
    %322 = vmatprep.subr.bf16.mxu0 0
    %323 = vmatpush2.bf16.msra.mxu0 0
    %324 = vmatprep.mubr.bf16.mxu0 0
    %325 = vmatmul.mubr.bf16.gmra.mxu0 %v283
    %v326 = vpop.f32.mrf.mxu0
    %v327 = vadd.f32 %v240, %v326
    %v328 = vpop.f32.mrf.mxu0
    %v329 = vadd.f32 %v244, %v328
    %v330 = vpop.f32.mrf.mxu0
    %v331 = vpop.f32.mrf.mxu0
    %332 = vdwg.mxu0
    %v333 = vmax.f32 %v327, 0.0
    %v334 = vmax.f32 %v329, 0.0
    %v335 = vpack.c.bf16 %v333, %v333
    %v336 = vpack.c.bf16 %v334, %v334
    %v337 = vld [vmem:[#allocation8] sm:$0xff]
    %v338 = vld [vmem:[#allocation8 + $0x8] sm:$0xff]
    %v339 = vld [vmem:[#allocation8 + $0x10] sm:$0xff]
    %v340 = vld [vmem:[#allocation8 + $0x18] sm:$0xff]
    %v341 = vld [vmem:[#allocation8 + $0x20] sm:$0xff]
    %v342 = vld [vmem:[#allocation8 + $0x28] sm:$0xff]
    %v343 = vld [vmem:[#allocation8 + $0x30] sm:$0xff]
    %v344 = vld [vmem:[#allocation8 + $0x38] sm:$0xff]
    %v345 = vld [vmem:[#allocation8 + $0x40] sm:$0xff]
    %v346 = vld [vmem:[#allocation8 + $0x48] sm:$0xff]
    %v347 = vld [vmem:[#allocation8 + $0x50] sm:$0xff]
    %v348 = vld [vmem:[#allocation8 + $0x58] sm:$0xff]
    %v349 = vld [vmem:[#allocation8 + $0x60] sm:$0xff]
    %v350 = vld [vmem:[#allocation8 + $0x68] sm:$0xff]
    %v351 = vld [vmem:[#allocation8 + $0x70] sm:$0xff]
    %v352 = vld [vmem:[#allocation8 + $0x78] sm:$0xff]
    %v353 = vld [vmem:[#allocation8 + $0x80] sm:$0xff]
    %v354 = vld [vmem:[#allocation8 + $0x88] sm:$0xff]
    %v355 = vld [vmem:[#allocation8 + $0x90] sm:$0xff]
    %v356 = vld [vmem:[#allocation8 + $0x98] sm:$0xff]
    %v357 = vld [vmem:[#allocation8 + $0xa0] sm:$0xff]
    %v358 = vld [vmem:[#allocation8 + $0xa8] sm:$0xff]
    %v359 = vld [vmem:[#allocation8 + $0xb0] sm:$0xff]
    %v360 = vld [vmem:[#allocation8 + $0xb8] sm:$0xff]
    %v361 = vld [vmem:[#allocation8 + $0xc0] sm:$0xff]
    %v362 = vld [vmem:[#allocation8 + $0xc8] sm:$0xff]
    %v363 = vld [vmem:[#allocation8 + $0xd0] sm:$0xff]
    %v364 = vld [vmem:[#allocation8 + $0xd8] sm:$0xff]
    %v365 = vld [vmem:[#allocation8 + $0xe0] sm:$0xff]
    %v366 = vld [vmem:[#allocation8 + $0xe8] sm:$0xff]
    %v367 = vld [vmem:[#allocation8 + $0xf0] sm:$0xff]
    %v368 = vld [vmem:[#allocation8 + $0xf8] sm:$0xff]
    %v370 = vlaneseq
    %v371 = vshrl.u32 %v370, 7
    %v372 = vsub.s32 0, %v371
    %v373 = vrot.slane %v125, %v372
    %v374 = vlaneseq
    %v375 = vshrl.u32 %v374, 7
    %v376 = vsub.s32 1, %v375
    %v377 = vrot.slane %v125, %v376
    %v412 = vunpack.c.l.b16 %v337
    %v413 = vunpack.c.h.b16 %v337
    %v414 = vunpack.c.l.b16 %v338
    %v415 = vunpack.c.h.b16 %v338
    %v416 = vunpack.c.l.b16 %v339
    %v417 = vunpack.c.h.b16 %v339
    %v418 = vunpack.c.l.b16 %v340
    %v419 = vunpack.c.h.b16 %v340
    %v420 = vunpack.c.l.b16 %v341
    %v421 = vunpack.c.h.b16 %v341
    %v422 = vunpack.c.l.b16 %v342
    %v423 = vunpack.c.h.b16 %v342
    %v424 = vunpack.c.l.b16 %v343
    %v425 = vunpack.c.h.b16 %v343
    %v426 = vunpack.c.l.b16 %v344
    %v427 = vunpack.c.h.b16 %v344
    %v428 = vunpack.c.l.b16 %v345
    %v429 = vunpack.c.h.b16 %v345
    %v430 = vunpack.c.l.b16 %v346
    %v431 = vunpack.c.h.b16 %v346
    %v432 = vunpack.c.l.b16 %v347
    %v433 = vunpack.c.h.b16 %v347
    %v434 = vunpack.c.l.b16 %v348
    %v435 = vunpack.c.h.b16 %v348
    %v436 = vunpack.c.l.b16 %v349
    %v437 = vunpack.c.h.b16 %v349
    %v438 = vunpack.c.l.b16 %v350
    %v439 = vunpack.c.h.b16 %v350
    %v440 = vunpack.c.l.b16 %v351
    %v441 = vunpack.c.h.b16 %v351
    %v442 = vunpack.c.l.b16 %v352
    %v443 = vunpack.c.h.b16 %v352
    %v444 = vunpack.c.l.b16 %v353
    %v445 = vunpack.c.h.b16 %v353
    %v446 = vunpack.c.l.b16 %v354
    %v447 = vunpack.c.h.b16 %v354
    %v448 = vunpack.c.l.b16 %v355
    %v449 = vunpack.c.h.b16 %v355
    %v450 = vunpack.c.l.b16 %v356
    %v451 = vunpack.c.h.b16 %v356
    %v452 = vunpack.c.l.b16 %v357
    %v453 = vunpack.c.h.b16 %v357
    %v454 = vunpack.c.l.b16 %v358
    %v455 = vunpack.c.h.b16 %v358
    %v456 = vunpack.c.l.b16 %v359
    %v457 = vunpack.c.h.b16 %v359
    %v458 = vunpack.c.l.b16 %v360
    %v459 = vunpack.c.h.b16 %v360
    %v460 = vunpack.c.l.b16 %v361
    %v461 = vunpack.c.h.b16 %v361
    %v462 = vunpack.c.l.b16 %v362
    %v463 = vunpack.c.h.b16 %v362
    %v464 = vunpack.c.l.b16 %v363
    %v465 = vunpack.c.h.b16 %v363
    %v466 = vunpack.c.l.b16 %v364
    %v467 = vunpack.c.h.b16 %v364
    %v468 = vunpack.c.l.b16 %v365
    %v469 = vunpack.c.h.b16 %v365
    %v470 = vunpack.c.l.b16 %v366
    %v471 = vunpack.c.h.b16 %v366
    %v472 = vunpack.c.l.b16 %v367
    %v473 = vunpack.c.h.b16 %v367
    %v474 = vunpack.c.l.b16 %v368
    %v475 = vunpack.c.h.b16 %v368
    %v476 = vpack.c.b16 %v414, %v412
    %v477 = vpack.c.b16 %v415, %v413
    %v478 = vpack.c.b16 %v418, %v416
    %v479 = vpack.c.b16 %v419, %v417
    %v480 = vpack.c.b16 %v422, %v420
    %v481 = vpack.c.b16 %v423, %v421
    %v482 = vpack.c.b16 %v426, %v424
    %v483 = vpack.c.b16 %v427, %v425
    %v484 = vpack.c.b16 %v430, %v428
    %v485 = vpack.c.b16 %v431, %v429
    %v486 = vpack.c.b16 %v434, %v432
    %v487 = vpack.c.b16 %v435, %v433
    %v488 = vpack.c.b16 %v438, %v436
    %v489 = vpack.c.b16 %v439, %v437
    %v490 = vpack.c.b16 %v442, %v440
    %v491 = vpack.c.b16 %v443, %v441
    %v492 = vpack.c.b16 %v446, %v444
    %v493 = vpack.c.b16 %v447, %v445
    %v494 = vpack.c.b16 %v450, %v448
    %v495 = vpack.c.b16 %v451, %v449
    %v496 = vpack.c.b16 %v454, %v452
    %v497 = vpack.c.b16 %v455, %v453
    %v498 = vpack.c.b16 %v458, %v456
    %v499 = vpack.c.b16 %v459, %v457
    %v500 = vpack.c.b16 %v462, %v460
    %v501 = vpack.c.b16 %v463, %v461
    %v502 = vpack.c.b16 %v466, %v464
    %v503 = vpack.c.b16 %v467, %v465
    %v504 = vpack.c.b16 %v470, %v468
    %v505 = vpack.c.b16 %v471, %v469
    %v506 = vpack.c.b16 %v474, %v472
    %v507 = vpack.c.b16 %v475, %v473
    %540 = vmatprep.subr.bf16.mxu0 %v491
    %541 = vmatpush1.bf16.msra.mxu0 %v490
    %542 = vmatprep.subr.bf16.mxu0 %v489
    %543 = vmatpush1.bf16.msra.mxu0 %v488
    %544 = vmatprep.subr.bf16.mxu0 %v487
    %545 = vmatpush1.bf16.msra.mxu0 %v486
    %546 = vmatprep.subr.bf16.mxu0 %v485
    %547 = vmatpush1.bf16.msra.mxu0 %v484
    %548 = vmatprep.subr.bf16.mxu0 %v483
    %549 = vmatpush1.bf16.msra.mxu0 %v482
    %550 = vmatprep.subr.bf16.mxu0 %v481
    %551 = vmatpush1.bf16.msra.mxu0 %v480
    %552 = vmatprep.subr.bf16.mxu0 %v479
    %553 = vmatpush1.bf16.msra.mxu0 %v478
    %554 = vmatprep.subr.bf16.mxu0 %v477
    %555 = vmatpush1.bf16.msra.mxu0 %v476
    %556 = vmatprep.subr.bf16.mxu0 %v507
    %557 = vmatpush2.bf16.msra.mxu0 %v506
    %558 = vmatprep.subr.bf16.mxu0 %v505
    %559 = vmatpush2.bf16.msra.mxu0 %v504
    %560 = vmatprep.subr.bf16.mxu0 %v503
    %561 = vmatpush2.bf16.msra.mxu0 %v502
    %562 = vmatprep.subr.bf16.mxu0 %v501
    %563 = vmatpush2.bf16.msra.mxu0 %v500
    %564 = vmatprep.subr.bf16.mxu0 %v499
    %565 = vmatpush2.bf16.msra.mxu0 %v498
    %566 = vmatprep.subr.bf16.mxu0 %v497
    %567 = vmatpush2.bf16.msra.mxu0 %v496
    %568 = vmatprep.subr.bf16.mxu0 %v495
    %569 = vmatpush2.bf16.msra.mxu0 %v494
    %570 = vmatprep.subr.bf16.mxu0 %v493
    %571 = vmatpush2.bf16.msra.mxu0 %v492
    %572 = vmatprep.mubr.bf16.mxu0 %v336
    %573 = vmatmul.mubr.bf16.gmra.mxu0 %v335
    %v574 = vpop.f32.mrf.mxu0
    %v575 = vadd.f32 %v373, %v574
    %v576 = vpop.f32.mrf.mxu0
    %v577 = vadd.f32 %v377, %v576
    %v578 = vpop.f32.mrf.mxu0
    %v579 = vpop.f32.mrf.mxu0
    %580 = vdwg.mxu0
    %v581 = vmax.f32 %v575, 0.0
    %v582 = vmax.f32 %v577, 0.0
    %v583 = vpack.c.bf16 %v581, %v581
    %v584 = vpack.c.bf16 %v582, %v582
    %v585 = vld [vmem:[#allocation10] sm:$0xff]
    %v586 = vld [vmem:[#allocation10 + $0x8] sm:$0xff]
    %v587 = vld [vmem:[#allocation10 + $0x10] sm:$0xff]
    %v588 = vld [vmem:[#allocation10 + $0x18] sm:$0xff]
    %v589 = vld [vmem:[#allocation10 + $0x20] sm:$0xff]
    %v590 = vld [vmem:[#allocation10 + $0x28] sm:$0xff]
    %v591 = vld [vmem:[#allocation10 + $0x30] sm:$0xff]
    %v592 = vld [vmem:[#allocation10 + $0x38] sm:$0xff]
    %v593 = vld [vmem:[#allocation10 + $0x40] sm:$0xff]
    %v594 = vld [vmem:[#allocation10 + $0x48] sm:$0xff]
    %v595 = vld [vmem:[#allocation10 + $0x50] sm:$0xff]
    %v596 = vld [vmem:[#allocation10 + $0x58] sm:$0xff]
    %v597 = vld [vmem:[#allocation10 + $0x60] sm:$0xff]
    %v598 = vld [vmem:[#allocation10 + $0x68] sm:$0xff]
    %v599 = vld [vmem:[#allocation10 + $0x70] sm:$0xff]
    %v600 = vld [vmem:[#allocation10 + $0x78] sm:$0xff]
    %v601 = vld [vmem:[#allocation10 + $0x80] sm:$0xff]
    %v602 = vld [vmem:[#allocation10 + $0x88] sm:$0xff]
    %v603 = vld [vmem:[#allocation10 + $0x90] sm:$0xff]
    %v604 = vld [vmem:[#allocation10 + $0x98] sm:$0xff]
    %v605 = vld [vmem:[#allocation10 + $0xa0] sm:$0xff]
    %v606 = vld [vmem:[#allocation10 + $0xa8] sm:$0xff]
    %v607 = vld [vmem:[#allocation10 + $0xb0] sm:$0xff]
    %v608 = vld [vmem:[#allocation10 + $0xb8] sm:$0xff]
    %v609 = vld [vmem:[#allocation10 + $0xc0] sm:$0xff]
    %v610 = vld [vmem:[#allocation10 + $0xc8] sm:$0xff]
    %v611 = vld [vmem:[#allocation10 + $0xd0] sm:$0xff]
    %v612 = vld [vmem:[#allocation10 + $0xd8] sm:$0xff]
    %v613 = vld [vmem:[#allocation10 + $0xe0] sm:$0xff]
    %v614 = vld [vmem:[#allocation10 + $0xe8] sm:$0xff]
    %v615 = vld [vmem:[#allocation10 + $0xf0] sm:$0xff]
    %v616 = vld [vmem:[#allocation10 + $0xf8] sm:$0xff]
    %v618 = vlaneseq
    %v619 = vshrl.u32 %v618, 7
    %v620 = vsub.s32 0, %v619
    %v621 = vrot.slane %v127, %v620
    %v622 = vlaneseq
    %v623 = vshrl.u32 %v622, 7
    %v624 = vsub.s32 1, %v623
    %v625 = vrot.slane %v127, %v624
    %v660 = vunpack.c.l.b16 %v585
    %v661 = vunpack.c.h.b16 %v585
    %v662 = vunpack.c.l.b16 %v586
    %v663 = vunpack.c.h.b16 %v586
    %v664 = vunpack.c.l.b16 %v587
    %v665 = vunpack.c.h.b16 %v587
    %v666 = vunpack.c.l.b16 %v588
    %v667 = vunpack.c.h.b16 %v588
    %v668 = vunpack.c.l.b16 %v589
    %v669 = vunpack.c.h.b16 %v589
    %v670 = vunpack.c.l.b16 %v590
    %v671 = vunpack.c.h.b16 %v590
    %v672 = vunpack.c.l.b16 %v591
    %v673 = vunpack.c.h.b16 %v591
    %v674 = vunpack.c.l.b16 %v592
    %v675 = vunpack.c.h.b16 %v592
    %v676 = vunpack.c.l.b16 %v593
    %v677 = vunpack.c.h.b16 %v593
    %v678 = vunpack.c.l.b16 %v594
    %v679 = vunpack.c.h.b16 %v594
    %v680 = vunpack.c.l.b16 %v595
    %v681 = vunpack.c.h.b16 %v595
    %v682 = vunpack.c.l.b16 %v596
    %v683 = vunpack.c.h.b16 %v596
    %v684 = vunpack.c.l.b16 %v597
    %v685 = vunpack.c.h.b16 %v597
    %v686 = vunpack.c.l.b16 %v598
    %v687 = vunpack.c.h.b16 %v598
    %v688 = vunpack.c.l.b16 %v599
    %v689 = vunpack.c.h.b16 %v599
    %v690 = vunpack.c.l.b16 %v600
    %v691 = vunpack.c.h.b16 %v600
    %v692 = vunpack.c.l.b16 %v601
    %v693 = vunpack.c.h.b16 %v601
    %v694 = vunpack.c.l.b16 %v602
    %v695 = vunpack.c.h.b16 %v602
    %v696 = vunpack.c.l.b16 %v603
    %v697 = vunpack.c.h.b16 %v603
    %v698 = vunpack.c.l.b16 %v604
    %v699 = vunpack.c.h.b16 %v604
    %v700 = vunpack.c.l.b16 %v605
    %v701 = vunpack.c.h.b16 %v605
    %v702 = vunpack.c.l.b16 %v606
    %v703 = vunpack.c.h.b16 %v606
    %v704 = vunpack.c.l.b16 %v607
    %v705 = vunpack.c.h.b16 %v607
    %v706 = vunpack.c.l.b16 %v608
    %v707 = vunpack.c.h.b16 %v608
    %v708 = vunpack.c.l.b16 %v609
    %v709 = vunpack.c.h.b16 %v609
    %v710 = vunpack.c.l.b16 %v610
    %v711 = vunpack.c.h.b16 %v610
    %v712 = vunpack.c.l.b16 %v611
    %v713 = vunpack.c.h.b16 %v611
    %v714 = vunpack.c.l.b16 %v612
    %v715 = vunpack.c.h.b16 %v612
    %v716 = vunpack.c.l.b16 %v613
    %v717 = vunpack.c.h.b16 %v613
    %v718 = vunpack.c.l.b16 %v614
    %v719 = vunpack.c.h.b16 %v614
    %v720 = vunpack.c.l.b16 %v615
    %v721 = vunpack.c.h.b16 %v615
    %v722 = vunpack.c.l.b16 %v616
    %v723 = vunpack.c.h.b16 %v616
    %v724 = vpack.c.b16 %v662, %v660
    %v725 = vpack.c.b16 %v663, %v661
    %v726 = vpack.c.b16 %v666, %v664
    %v727 = vpack.c.b16 %v667, %v665
    %v728 = vpack.c.b16 %v670, %v668
    %v729 = vpack.c.b16 %v671, %v669
    %v730 = vpack.c.b16 %v674, %v672
    %v731 = vpack.c.b16 %v675, %v673
    %v732 = vpack.c.b16 %v678, %v676
    %v733 = vpack.c.b16 %v679, %v677
    %v734 = vpack.c.b16 %v682, %v680
    %v735 = vpack.c.b16 %v683, %v681
    %v736 = vpack.c.b16 %v686, %v684
    %v737 = vpack.c.b16 %v687, %v685
    %v738 = vpack.c.b16 %v690, %v688
    %v739 = vpack.c.b16 %v691, %v689
    %v740 = vpack.c.b16 %v694, %v692
    %v741 = vpack.c.b16 %v695, %v693
    %v742 = vpack.c.b16 %v698, %v696
    %v743 = vpack.c.b16 %v699, %v697
    %v744 = vpack.c.b16 %v702, %v700
    %v745 = vpack.c.b16 %v703, %v701
    %v746 = vpack.c.b16 %v706, %v704
    %v747 = vpack.c.b16 %v707, %v705
    %v748 = vpack.c.b16 %v710, %v708
    %v749 = vpack.c.b16 %v711, %v709
    %v750 = vpack.c.b16 %v714, %v712
    %v751 = vpack.c.b16 %v715, %v713
    %v752 = vpack.c.b16 %v718, %v716
    %v753 = vpack.c.b16 %v719, %v717
    %v754 = vpack.c.b16 %v722, %v720
    %v755 = vpack.c.b16 %v723, %v721
    %788 = vmatprep.subr.bf16.mxu0 %v739
    %789 = vmatpush1.bf16.msra.mxu0 %v738
    %790 = vmatprep.subr.bf16.mxu0 %v737
    %791 = vmatpush1.bf16.msra.mxu0 %v736
    %792 = vmatprep.subr.bf16.mxu0 %v735
    %793 = vmatpush1.bf16.msra.mxu0 %v734
    %794 = vmatprep.subr.bf16.mxu0 %v733
    %795 = vmatpush1.bf16.msra.mxu0 %v732
    %796 = vmatprep.subr.bf16.mxu0 %v731
    %797 = vmatpush1.bf16.msra.mxu0 %v730
    %798 = vmatprep.subr.bf16.mxu0 %v729
    %799 = vmatpush1.bf16.msra.mxu0 %v728
    %800 = vmatprep.subr.bf16.mxu0 %v727
    %801 = vmatpush1.bf16.msra.mxu0 %v726
    %802 = vmatprep.subr.bf16.mxu0 %v725
    %803 = vmatpush1.bf16.msra.mxu0 %v724
    %804 = vmatprep.subr.bf16.mxu0 %v755
    %805 = vmatpush2.bf16.msra.mxu0 %v754
    %806 = vmatprep.subr.bf16.mxu0 %v753
    %807 = vmatpush2.bf16.msra.mxu0 %v752
    %808 = vmatprep.subr.bf16.mxu0 %v751
    %809 = vmatpush2.bf16.msra.mxu0 %v750
    %810 = vmatprep.subr.bf16.mxu0 %v749
    %811 = vmatpush2.bf16.msra.mxu0 %v748
    %812 = vmatprep.subr.bf16.mxu0 %v747
    %813 = vmatpush2.bf16.msra.mxu0 %v746
    %814 = vmatprep.subr.bf16.mxu0 %v745
    %815 = vmatpush2.bf16.msra.mxu0 %v744
    %816 = vmatprep.subr.bf16.mxu0 %v743
    %817 = vmatpush2.bf16.msra.mxu0 %v742
    %818 = vmatprep.subr.bf16.mxu0 %v741
    %819 = vmatpush2.bf16.msra.mxu0 %v740
    %820 = vmatprep.mubr.bf16.mxu0 %v584
    %821 = vmatmul.mubr.bf16.gmra.mxu0 %v583
    %v822 = vpop.f32.mrf.mxu0
    %v823 = vadd.f32 %v621, %v822
    %v824 = vpop.f32.mrf.mxu0
    %v825 = vadd.f32 %v625, %v824
    %v826 = vpop.f32.mrf.mxu0
    %v827 = vpop.f32.mrf.mxu0
    %828 = vdwg.mxu0
    %v829 = vmax.f32 %v823, 0.0
    %v830 = vmax.f32 %v825, 0.0
    %v831 = vpack.c.bf16 %v829, %v829
    %v832 = vpack.c.bf16 %v830, %v830
    %v833 = vld [vmem:[#allocation11] sm:$0xf]
    %v834 = vld [vmem:[#allocation11 + $0x4] sm:$0xf]
    %v835 = vld [vmem:[#allocation11 + $0x8] sm:$0xf]
    %v836 = vld [vmem:[#allocation11 + $0xc] sm:$0xf]
    %v837 = vld [vmem:[#allocation11 + $0x10] sm:$0xf]
    %v838 = vld [vmem:[#allocation11 + $0x14] sm:$0xf]
    %v839 = vld [vmem:[#allocation11 + $0x18] sm:$0xf]
    %v840 = vld [vmem:[#allocation11 + $0x1c] sm:$0xf]
    %v841 = vld [vmem:[#allocation11 + $0x20] sm:$0xf]
    %v842 = vld [vmem:[#allocation11 + $0x24] sm:$0xf]
    %v843 = vld [vmem:[#allocation11 + $0x28] sm:$0xf]
    %v844 = vld [vmem:[#allocation11 + $0x2c] sm:$0xf]
    %v845 = vld [vmem:[#allocation11 + $0x30] sm:$0xf]
    %v846 = vld [vmem:[#allocation11 + $0x34] sm:$0xf]
    %v847 = vld [vmem:[#allocation11 + $0x38] sm:$0xf]
    %v848 = vld [vmem:[#allocation11 + $0x3c] sm:$0xf]
    %v849 = vld [vmem:[#allocation11 + $0x40] sm:$0xf]
    %v850 = vld [vmem:[#allocation11 + $0x44] sm:$0xf]
    %v851 = vld [vmem:[#allocation11 + $0x48] sm:$0xf]
    %v852 = vld [vmem:[#allocation11 + $0x4c] sm:$0xf]
    %v853 = vld [vmem:[#allocation11 + $0x50] sm:$0xf]
    %v854 = vld [vmem:[#allocation11 + $0x54] sm:$0xf]
    %v855 = vld [vmem:[#allocation11 + $0x58] sm:$0xf]
    %v856 = vld [vmem:[#allocation11 + $0x5c] sm:$0xf]
    %v857 = vld [vmem:[#allocation11 + $0x60] sm:$0xf]
    %v858 = vld [vmem:[#allocation11 + $0x64] sm:$0xf]
    %v859 = vld [vmem:[#allocation11 + $0x68] sm:$0xf]
    %v860 = vld [vmem:[#allocation11 + $0x6c] sm:$0xf]
    %v861 = vld [vmem:[#allocation11 + $0x70] sm:$0xf]
    %v862 = vld [vmem:[#allocation11 + $0x74] sm:$0xf]
    %v863 = vld [vmem:[#allocation11 + $0x78] sm:$0xf]
    %v864 = vld [vmem:[#allocation11 + $0x7c] sm:$0xf]
    %v897 = vunpack.c.l.b16 %v833
    %v898 = vunpack.c.l.b16 %v834
    %v899 = vunpack.c.l.b16 %v835
    %v900 = vunpack.c.l.b16 %v836
    %v901 = vunpack.c.l.b16 %v837
    %v902 = vunpack.c.l.b16 %v838
    %v903 = vunpack.c.l.b16 %v839
    %v904 = vunpack.c.l.b16 %v840
    %v905 = vunpack.c.l.b16 %v841
    %v906 = vunpack.c.l.b16 %v842
    %v907 = vunpack.c.l.b16 %v843
    %v908 = vunpack.c.l.b16 %v844
    %v909 = vunpack.c.l.b16 %v845
    %v910 = vunpack.c.l.b16 %v846
    %v911 = vunpack.c.l.b16 %v847
    %v912 = vunpack.c.l.b16 %v848
    %v913 = vunpack.c.l.b16 %v849
    %v914 = vunpack.c.l.b16 %v850
    %v915 = vunpack.c.l.b16 %v851
    %v916 = vunpack.c.l.b16 %v852
    %v917 = vunpack.c.l.b16 %v853
    %v918 = vunpack.c.l.b16 %v854
    %v919 = vunpack.c.l.b16 %v855
    %v920 = vunpack.c.l.b16 %v856
    %v921 = vunpack.c.l.b16 %v857
    %v922 = vunpack.c.l.b16 %v858
    %v923 = vunpack.c.l.b16 %v859
    %v924 = vunpack.c.l.b16 %v860
    %v925 = vunpack.c.l.b16 %v861
    %v926 = vunpack.c.l.b16 %v862
    %v927 = vunpack.c.l.b16 %v863
    %v928 = vunpack.c.l.b16 %v864
    %v929 = vpack.c.b16 %v898, %v897
    %v930 = vpack.c.b16 %v900, %v899
    %v931 = vpack.c.b16 %v902, %v901
    %v932 = vpack.c.b16 %v904, %v903
    %v933 = vpack.c.b16 %v906, %v905
    %v934 = vpack.c.b16 %v908, %v907
    %v935 = vpack.c.b16 %v910, %v909
    %v936 = vpack.c.b16 %v912, %v911
    %v937 = vpack.c.b16 %v914, %v913
    %v938 = vpack.c.b16 %v916, %v915
    %v939 = vpack.c.b16 %v918, %v917
    %v940 = vpack.c.b16 %v920, %v919
    %v941 = vpack.c.b16 %v922, %v921
    %v942 = vpack.c.b16 %v924, %v923
    %v943 = vpack.c.b16 %v926, %v925
    %v944 = vpack.c.b16 %v928, %v927
    %961 = vmatprep.subr.bf16.mxu0 0
    %962 = vmatpush1.bf16.msra.mxu0 %v936
    %963 = vmatprep.subr.bf16.mxu0 0
    %964 = vmatpush1.bf16.msra.mxu0 %v935
    %965 = vmatprep.subr.bf16.mxu0 0
    %966 = vmatpush1.bf16.msra.mxu0 %v934
    %967 = vmatprep.subr.bf16.mxu0 0
    %968 = vmatpush1.bf16.msra.mxu0 %v933
    %969 = vmatprep.subr.bf16.mxu0 0
    %970 = vmatpush1.bf16.msra.mxu0 %v932
    %971 = vmatprep.subr.bf16.mxu0 0
    %972 = vmatpush1.bf16.msra.mxu0 %v931
    %973 = vmatprep.subr.bf16.mxu0 0
    %974 = vmatpush1.bf16.msra.mxu0 %v930
    %975 = vmatprep.subr.bf16.mxu0 0
    %976 = vmatpush1.bf16.msra.mxu0 %v929
    %977 = vmatprep.subr.bf16.mxu0 0
    %978 = vmatpush2.bf16.msra.mxu0 %v944
    %979 = vmatprep.subr.bf16.mxu0 0
    %980 = vmatpush2.bf16.msra.mxu0 %v943
    %981 = vmatprep.subr.bf16.mxu0 0
    %982 = vmatpush2.bf16.msra.mxu0 %v942
    %983 = vmatprep.subr.bf16.mxu0 0
    %984 = vmatpush2.bf16.msra.mxu0 %v941
    %985 = vmatprep.subr.bf16.mxu0 0
    %986 = vmatpush2.bf16.msra.mxu0 %v940
    %987 = vmatprep.subr.bf16.mxu0 0
    %988 = vmatpush2.bf16.msra.mxu0 %v939
    %989 = vmatprep.subr.bf16.mxu0 0
    %990 = vmatpush2.bf16.msra.mxu0 %v938
    %991 = vmatprep.subr.bf16.mxu0 0
    %992 = vmatpush2.bf16.msra.mxu0 %v937
    %993 = vmatprep.mubr.bf16.mxu0 %v832
    %994 = vmatmul.mubr.bf16.gmra.mxu0 %v831
    %v995 = vpop.f32.mrf.mxu0
    %v996 = vadd.f32 %v128, %v995
    %v997 = vpop.f32.mrf.mxu0
    %v998 = vpop.f32.mrf.mxu0
    %v999 = vpop.f32.mrf.mxu0
    %1000 = vdwg.mxu0
    %1001 = vst [vmem:[#allocation14] sm:$0xff] %v996
    // Predicated region
    $region58: #{tpu_custom_call.1} parent=1 // pred_check
      _
    $region59: #{tpu_custom_call.1} parent=1 // pred_check_branch
      %1003 = sbr.rel (0) target = $region61
    $region60: #{tpu_custom_call.1} parent=1 // pred_region
      %s1005 = ssub.s32 128, 128
      %1006 = vsyncadd [#allocation4], %s1005
      %s1008 = sshll.u32 [#allocation14], 4
      %s1009 = int_to_ptr.vmem [resolvable:$true] %s1008
      %1011 = dma.vmem_to_hbm [thread:$0]  %s1009, 128, %s7, [#allocation4]
    $region61: #{tpu_custom_call.1} parent=1 // pred_fallthru
      _
    // Predicated region
    $region62: #{tpu_custom_call.1} parent=1 // pred_check
      _
    $region63: #{tpu_custom_call.1} parent=1 // pred_check_branch
      %1013 = sbr.rel (0) target = $region65
    $region64: #{tpu_custom_call.1} parent=1 // pred_region
      %1014 = dma.done [#allocation4], 128
    $region65: #{tpu_custom_call.1} parent=1 // pred_fallthru
      _
    %1015 = vsyncpa [#allocation3], 1
    %1016 = vsyncpa [#allocation6], 1
    %1017 = vsyncpa [#allocation9], 1
    %1018 = vsyncpa [#allocation12], 1
    %1019 = vsyncpa [#allocation4], 1

</llo_original>
